<compile_context>
chip_gen: v6e
topology: v6e:2x2x1
jax: 0.10.0
libtpu: 0.0.40
codegen_flags: <defaults>
</compile_context>

<pallas_src>
import functools

import jax
import jax.numpy as jnp
from jax.experimental import pallas as pl
from jax.experimental.pallas import tpu as pltpu

HIDDEN = 128   # fc_1 width (fixed by the PyTorch module: nn.Linear(num_inputs, 128))
LANE = 128     # TPU lane width; fc_2 is lane-padded to this *inside* the kernel only


def _round_up(x, m):
    return (x + m - 1) // m * m


def trpo_forward_kernel(x_ref, w1_ref, b1_ref, w2_ref, b2_ref, out_ref):
    """softmax(relu(x @ W1 + b1) @ W2p + b2p)[:, :num_outputs] for one batch tile."""
    # fc_1 + ReLU (f32 accumulation on the MXU).
    x = x_ref[...]
    h = jnp.dot(x, w1_ref[...], preferred_element_type=jnp.float32) + b1_ref[...]
    h = jnp.maximum(h, 0.0)

    # fc_2 + softmax over the action axis (matches F.softmax(..., dim=1)).
    # Compute is lane-padded to 128 action lanes: padded lanes carry a -1e30 bias,
    # so exp() underflows them to 0 and the normalization only sees real lanes.
    logits = jnp.dot(h, w2_ref[...], preferred_element_type=jnp.float32) + b2_ref[...]
    m = jnp.max(logits, axis=-1, keepdims=True)
    e = jnp.exp(logits - m)
    denom = jnp.sum(e, axis=-1, keepdims=True)
    # EUP approx reciprocal (off the VPU path) + one Newton refinement step so the
    # result stays within f32 round-off of an exact divide.
    inv = pl.reciprocal(denom, approx=True)
    inv = inv * (2.0 - denom * inv)
    # Store only the real action lanes: HBM output is (tm, num_outputs), not the
    # 128-lane padded tile (the kernel is HBM-bound, so narrow writes dominate).
    n_out = out_ref.shape[-1]
    out_ref[...] = (e * inv)[:, :n_out]


@functools.partial(jax.jit, static_argnames=("block_m",))
def trpo_forward(x, w1, b1, w2, b2, *, block_m=1024):
    """Pallas TPU TRPO.forward.  Batch many states per call to amortize overhead."""
    batch, num_inputs = x.shape
    hidden, num_outputs = w2.shape
    assert w1.shape == (num_inputs, hidden)
    assert hidden == HIDDEN
    assert num_outputs <= LANE, "fc_2 width must fit in one 128-lane vreg"

    # Lane-padded fc_2 params (compute-side only; the HBM output stays num_outputs
    # wide). Zero weight columns + a -1e30 bias make padded lanes vanish under the
    # max-subtracted softmax.
    w2p = jnp.zeros((hidden, LANE), jnp.float32).at[:, :num_outputs].set(w2)
    b2p = jnp.full((1, LANE), -1e30, jnp.float32).at[:, :num_outputs].set(b2)

    # Batch tiling.  No wrapper-side jnp.pad of x: a ragged last block is handled by
    # the Pallas pipeline (OOB reads unspecified, OOB writes dropped) and every row
    # is computed independently, so that is safe here.
    #   * large batches: >= 2 (even) grid steps so v7x's two TensorCores both get
    #     work; each tile capped at block_m rows (mem-bound sweet spot 512-2048).
    #   * small batches: a single grid step -- v5e/v6e have one TensorCore and the
    #     grid is a serial loop, so extra steps are pure ~0.35 us/step overhead.
    if batch >= 256:
        grid_m = 2 * pl.cdiv(pl.cdiv(batch, block_m), 2)
    else:
        grid_m = 1
    tm = _round_up(pl.cdiv(batch, grid_m), 8)       # sublane multiple for f32
    grid_m = pl.cdiv(batch, tm)

    rows = tm * grid_m                              # rows actually touched (>= batch)
    cost = pl.CostEstimate(
        flops=2 * rows * hidden * (num_inputs + LANE),
        transcendentals=rows * LANE,
        bytes_accessed=4 * (rows * num_inputs
                            + num_inputs * hidden + hidden
                            + hidden * LANE + LANE
                            + rows * num_outputs),
    )

    return pl.pallas_call(
        trpo_forward_kernel,
        out_shape=jax.ShapeDtypeStruct((batch, num_outputs), jnp.float32),
        grid_spec=pltpu.PrefetchScalarGridSpec(
            num_scalar_prefetch=0,
            grid=(grid_m,),
            in_specs=[
                pl.BlockSpec((tm, num_inputs), lambda i: (i, 0)),      # x tile
                pl.BlockSpec((num_inputs, hidden), lambda i: (0, 0)),  # w1 (VMEM-resident)
                pl.BlockSpec((1, hidden), lambda i: (0, 0)),           # b1 (resident)
                pl.BlockSpec((hidden, LANE), lambda i: (0, 0)),        # w2 padded (resident)
                pl.BlockSpec((1, LANE), lambda i: (0, 0)),             # b2 padded (resident)
            ],
            out_specs=pl.BlockSpec((tm, num_outputs), lambda i: (i, 0)),
        ),
        compiler_params=pltpu.CompilerParams(
            dimension_semantics=("parallel",),   # shards the batch grid over v7x's 2 TCs
        ),
        cost_estimate=cost,
    )(x, w1, b1, w2p, b2p)


def xavier_uniform(key, shape):
    # shape = (fan_in, fan_out) in our (in, out) layout
    fan_in, fan_out = shape
    bound = jnp.sqrt(6.0 / (fan_in + fan_out))
    return jax.random.uniform(key, shape, jnp.float32, minval=-bound, maxval=bound)


# TODO(synk): TRPO.train_model / conjugate_gradient / fisher_vector_product are
# torch.autograd-based training-time host logic (Hessian-vector products), not a
# forward-pass kernel, and are intentionally not implemented here.

if __name__ == "__main__":
    num_inputs = 32
    num_outputs = 8
    batch = 64          # small demo batch; real RL rollouts should batch much larger

    key = jax.random.PRNGKey(0)
    k_x, k_w1, k_b1, k_w2, k_b2 = jax.random.split(key, 5)

    x = jax.random.normal(k_x, (batch, num_inputs), jnp.float32)
    # Deterministic xavier-uniform weights (as in the module __init__); biases use
    # PyTorch Linear's default uniform(-1/sqrt(fan_in), 1/sqrt(fan_in)).
    w1 = xavier_uniform(k_w1, (num_inputs, HIDDEN))
    b1 = jax.random.uniform(k_b1, (1, HIDDEN), jnp.float32,
                            minval=-1.0 / jnp.sqrt(num_inputs),
                            maxval=1.0 / jnp.sqrt(num_inputs))
    w2 = xavier_uniform(k_w2, (HIDDEN, num_outputs))
    b2 = jax.random.uniform(k_b2, (1, num_outputs), jnp.float32,
                            minval=-1.0 / jnp.sqrt(HIDDEN),
                            maxval=1.0 / jnp.sqrt(HIDDEN))

    policy = trpo_forward(x, w1, b1, w2, b2)
    jax.block_until_ready(policy)

    # Pure-JAX reference for the kernel semantics.
    ref = jax.nn.softmax(jnp.maximum(x @ w1 + b1, 0.0) @ w2 + b2, axis=-1)
    assert policy.shape == (batch, num_outputs)
    assert jnp.allclose(policy, ref, atol=1e-5, rtol=1e-5)
    assert jnp.allclose(jnp.sum(policy, axis=-1), 1.0, atol=1e-5)

    # Tiny / ragged batch path (single grid step, partial last block) still works.
    policy_small = trpo_forward(x[:5], w1, b1, w2, b2)
    jax.block_until_ready(policy_small)
    assert policy_small.shape == (5, num_outputs)
    assert jnp.allclose(policy_small, ref[:5], atol=1e-5, rtol=1e-5)

    print("KERNEL_OK")
</pallas_src>

<mosaic_0001>
module attributes {stable_mosaic.version = 11 : i64} {
  func.func @trpo_forward_kernel(%arg0: i32, %arg1: memref<64x32xf32, #tpu.memory_space<vmem>>, %arg2: memref<32x128xf32, #tpu.memory_space<vmem>>, %arg3: memref<1x128xf32, #tpu.memory_space<vmem>>, %arg4: memref<128x128xf32, #tpu.memory_space<vmem>>, %arg5: memref<1x128xf32, #tpu.memory_space<vmem>>, %arg6: memref<64x8xf32, #tpu.memory_space<vmem>>) attributes {dimension_semantics = [#tpu.dimension_semantics<parallel>], iteration_bounds = array<i64: 1>, scalar_prefetch = 0 : i64, scratch_operands = 0 : i64, tpu.core_type = #tpu.core_type<tc>, window_params = [{transform_indices = @transform_0, window_bounds = array<i64: 64, 32>}, {pipeline_mode = #tpu.pipeline_mode<synchronous>, transform_indices = @transform_1, window_bounds = array<i64: 32, 128>}, {pipeline_mode = #tpu.pipeline_mode<synchronous>, transform_indices = @transform_2, window_bounds = array<i64: 1, 128>}, {pipeline_mode = #tpu.pipeline_mode<synchronous>, transform_indices = @transform_3, window_bounds = array<i64: 128, 128>}, {pipeline_mode = #tpu.pipeline_mode<synchronous>, transform_indices = @transform_4, window_bounds = array<i64: 1, 128>}, {transform_indices = @transform_5, window_bounds = array<i64: 64, 8>}]} {
    %c0 = arith.constant 0 : index
    %c0_0 = arith.constant 0 : index
    %0 = vector.load %arg1[%c0, %c0_0] : memref<64x32xf32, #tpu.memory_space<vmem>>, vector<64x32xf32>
    %c0_1 = arith.constant 0 : index
    %c0_2 = arith.constant 0 : index
    %1 = vector.load %arg2[%c0_1, %c0_2] : memref<32x128xf32, #tpu.memory_space<vmem>>, vector<32x128xf32>
    %cst = arith.constant dense<0.000000e+00> : vector<64x128xf32>
    %2 = tpu.matmul %0, %1, %cst {dimension_numbers = #tpu.dot_dimension_numbers<[1], [0], [0], [1], [0, 0, 1, 1], [], []>} : vector<64x32xf32>, vector<32x128xf32>, vector<64x128xf32> -> vector<64x128xf32>
    %c0_3 = arith.constant 0 : index
    %c0_4 = arith.constant 0 : index
    %3 = vector.load %arg3[%c0_3, %c0_4] : memref<1x128xf32, #tpu.memory_space<vmem>>, vector<1x128xf32>
    %4 = vector.broadcast %3 : vector<1x128xf32> to vector<64x128xf32>
    %5 = arith.addf %2, %4 : vector<64x128xf32>
    %cst_5 = arith.constant 0.000000e+00 : f32
    %6 = vector.broadcast %cst_5 : f32 to vector<64x128xf32>
    %7 = arith.maximumf %5, %6 : vector<64x128xf32>
    %c0_6 = arith.constant 0 : index
    %c0_7 = arith.constant 0 : index
    %8 = vector.load %arg4[%c0_6, %c0_7] : memref<128x128xf32, #tpu.memory_space<vmem>>, vector<128x128xf32>
    %cst_8 = arith.constant dense<0.000000e+00> : vector<64x128xf32>
    %9 = tpu.matmul %7, %8, %cst_8 {dimension_numbers = #tpu.dot_dimension_numbers<[1], [0], [0], [1], [0, 0, 1, 1], [], []>} : vector<64x128xf32>, vector<128x128xf32>, vector<64x128xf32> -> vector<64x128xf32>
    %c0_9 = arith.constant 0 : index
    %c0_10 = arith.constant 0 : index
    %10 = vector.load %arg5[%c0_9, %c0_10] : memref<1x128xf32, #tpu.memory_space<vmem>>, vector<1x128xf32>
    %11 = vector.broadcast %10 : vector<1x128xf32> to vector<64x128xf32>
    %12 = arith.addf %9, %11 : vector<64x128xf32>
    %cst_11 = arith.constant dense<0xFF800000> : vector<64xf32>
    %13 = vector.multi_reduction <maximumf>, %12, %cst_11 [1] : vector<64x128xf32> to vector<64xf32>
    %14 = vector.shape_cast %13 : vector<64xf32> to vector<64x1xf32>
    %15 = vector.broadcast %14 : vector<64x1xf32> to vector<64x128xf32>
    %16 = arith.subf %12, %15 : vector<64x128xf32>
    %17 = math.exp %16 : vector<64x128xf32>
    %cst_12 = arith.constant dense<0.000000e+00> : vector<64xf32>
    %18 = vector.multi_reduction <add>, %17, %cst_12 [1] : vector<64x128xf32> to vector<64xf32>
    %19 = vector.shape_cast %18 : vector<64xf32> to vector<64x1xf32>
    %20 = tpu.reciprocal %19 {approx = true} : vector<64x1xf32> -> vector<64x1xf32>
    %21 = arith.mulf %19, %20 : vector<64x1xf32>
    %cst_13 = arith.constant 2.000000e+00 : f32
    %22 = vector.broadcast %cst_13 : f32 to vector<64x1xf32>
    %23 = arith.subf %22, %21 : vector<64x1xf32>
    %24 = arith.mulf %20, %23 : vector<64x1xf32>
    %25 = vector.broadcast %24 : vector<64x1xf32> to vector<64x128xf32>
    %26 = arith.mulf %17, %25 : vector<64x128xf32>
    %27 = vector.extract_strided_slice %26 {offsets = [0, 0], sizes = [64, 8], strides = [1, 1]} : vector<64x128xf32> to vector<64x8xf32>
    %c0_14 = arith.constant 0 : index
    %c0_15 = arith.constant 0 : index
    %28 = vector.load %arg6[%c0_14, %c0_15] : memref<64x8xf32, #tpu.memory_space<vmem>>, vector<64x8xf32>
    tpu.vector_store %arg6[%c0_14, %c0_15], %27 {strides = array<i32>} : memref<64x8xf32, #tpu.memory_space<vmem>>, vector<64x8xf32>,
    return
  }
  func.func @transform_0(%arg0: i32) -> (i32, i32) {
    %c0_i32 = arith.constant 0 : i32
    %c0_i32_0 = arith.constant 0 : i32
    return %arg0, %c0_i32 : i32, i32
  }
  func.func @transform_1(%arg0: i32) -> (i32, i32) {
    %c0_i32 = arith.constant 0 : i32
    %c0_i32_0 = arith.constant 0 : i32
    %c0_i32_1 = arith.constant 0 : i32
    return %c0_i32, %c0_i32_0 : i32, i32
  }
  func.func @transform_2(%arg0: i32) -> (i32, i32) {
    %c0_i32 = arith.constant 0 : i32
    %c0_i32_0 = arith.constant 0 : i32
    %c0_i32_1 = arith.constant 0 : i32
    return %c0_i32, %c0_i32_0 : i32, i32
  }
  func.func @transform_3(%arg0: i32) -> (i32, i32) {
    %c0_i32 = arith.constant 0 : i32
    %c0_i32_0 = arith.constant 0 : i32
    %c0_i32_1 = arith.constant 0 : i32
    return %c0_i32, %c0_i32_0 : i32, i32
  }
  func.func @transform_4(%arg0: i32) -> (i32, i32) {
    %c0_i32 = arith.constant 0 : i32
    %c0_i32_0 = arith.constant 0 : i32
    %c0_i32_1 = arith.constant 0 : i32
    return %c0_i32, %c0_i32_0 : i32, i32
  }
  func.func @transform_5(%arg0: i32) -> (i32, i32) {
    %c0_i32 = arith.constant 0 : i32
    %c0_i32_0 = arith.constant 0 : i32
    return %arg0, %c0_i32 : i32, i32
  }
}

</mosaic_0001>

<llo_original>
// kernel: trpo_forward.1
$region0: #{trpo_forward.1}
  #allocation0 [shape = 'u32[]', space=smem, size = 0x4, offset = 0x4, fixed_abs, tag = 'smem constant byte address 0x4 - core index']
  #allocation1 [shape = 'u32[144,128]{1,0:T(1,128)}', space=vmem, size = 0x12000, scoped, tag = 'internal scratch']
  %s0 = inlined_call_operand.vmem [shape: f32[64,32], index: 0, kind: input, shape index: {}]
  %s1 = inlined_call_operand.vmem [shape: f32[32,128], index: 1, kind: input, shape index: {}]
  %s2 = inlined_call_operand.vmem [shape: f32[1,128], index: 2, kind: input, shape index: {}]
  %s3 = inlined_call_operand.vmem [shape: f32[128,128], index: 3, kind: input, shape index: {}]
  %s4 = inlined_call_operand.vmem [shape: f32[1,128], index: 4, kind: input, shape index: {}]
  %s5 = inlined_call_operand.vmem [shape: f32[64,8], index: 5, kind: output, shape index: {}]
  %s6 = sld [smem:[#allocation0]]
  $region30: #{trpo_forward.1} parent=0
    _
  %s8 = ssub.s32 1, %s6
  %s9 = scalar_select 0, %s8, %s6
  // Predicated region
  $region2: #{trpo_forward.1} parent=0 // pred_check
    _
  $region3: #{trpo_forward.1} parent=0 // pred_check_branch
    %11 = sbr.rel (0) target = $region5
  $region4: #{trpo_forward.1} parent=0 // pred_region
    _
  $region5: #{trpo_forward.1} parent=0 // pred_fallthru
    _
  // Predicated region
  $region6: #{trpo_forward.1} parent=0 // pred_check
    _
  $region7: #{trpo_forward.1} parent=0 // pred_check_branch
    %13 = sbr.rel (0) target = $region9
  $region8: #{trpo_forward.1} parent=0 // pred_region
    _
  $region9: #{trpo_forward.1} parent=0 // pred_fallthru
    _
  // Predicated region
  $region10: #{trpo_forward.1} parent=0 // pred_check
    _
  $region11: #{trpo_forward.1} parent=0 // pred_check_branch
    %15 = sbr.rel (0) target = $region13
  $region12: #{trpo_forward.1} parent=0 // pred_region
    _
  $region13: #{trpo_forward.1} parent=0 // pred_fallthru
    _
  // Predicated region
  $region14: #{trpo_forward.1} parent=0 // pred_check
    _
  $region15: #{trpo_forward.1} parent=0 // pred_check_branch
    %17 = sbr.rel (0) target = $region17
  $region16: #{trpo_forward.1} parent=0 // pred_region
    _
  $region17: #{trpo_forward.1} parent=0 // pred_fallthru
    _
  // Predicated region
  $region18: #{trpo_forward.1} parent=0 // pred_check
    _
  $region19: #{trpo_forward.1} parent=0 // pred_check_branch
    %19 = sbr.rel (0) target = $region21
  $region20: #{trpo_forward.1} parent=0 // pred_region
    _
  $region21: #{trpo_forward.1} parent=0 // pred_fallthru
    _
  %v20 = vld [vmem:[%s0] sm:$0xff]
  %v21 = vld [vmem:[%s0 + $0x8] sm:$0xff]
  %v22 = vld [vmem:[%s0 + $0x10] sm:$0xff]
  %v23 = vld [vmem:[%s0 + $0x18] sm:$0xff]
  %v24 = vld [vmem:[%s0 + $0x20] sm:$0xff]
  %v25 = vld [vmem:[%s0 + $0x28] sm:$0xff]
  %v26 = vld [vmem:[%s0 + $0x30] sm:$0xff]
  %v27 = vld [vmem:[%s0 + $0x38] sm:$0xff]
  %v28 = vld [vmem:[%s1] sm:$0xff]
  %v29 = vld [vmem:[%s1 + $0x8] sm:$0xff]
  %v30 = vld [vmem:[%s1 + $0x10] sm:$0xff]
  %v31 = vld [vmem:[%s1 + $0x18] sm:$0xff]
  %v32 = vld [vmem:[%s2] sm:$0x1]
  %v34 = vlaneseq
  %v35 = vshrl.u32 %v34, 7
  %v36 = vsub.s32 0, %v35
  %v37 = vrot.slane %v32, %v36
  %vm39 = vcmask 261120
  %v41 = vsel %vm39, %v20, 0
  %v44 = vsel %vm39, %v21, 0
  %v47 = vsel %vm39, %v22, 0
  %v50 = vsel %vm39, %v23, 0
  %v53 = vsel %vm39, %v24, 0
  %v56 = vsel %vm39, %v25, 0
  %v59 = vsel %vm39, %v26, 0
  %v62 = vsel %vm39, %v27, 0
  %64 = vmatprep.subr.mxu0 0.0
  %65 = vmatpush1.msra.mxu0 0.0
  %66 = vmatprep.subr.mxu0 0.0
  %67 = vmatpush1.msra.mxu0 0.0
  %68 = vmatprep.subr.mxu0 0.0
  %69 = vmatpush1.msra.mxu0 0.0
  %70 = vmatprep.subr.mxu0 0.0
  %71 = vmatpush1.msra.mxu0 0.0
  %72 = vmatprep.subr.mxu0 0.0
  %73 = vmatpush1.msra.mxu0 0.0
  %74 = vmatprep.subr.mxu0 0.0
  %75 = vmatpush1.msra.mxu0 0.0
  %76 = vmatprep.subr.mxu0 0.0
  %77 = vmatpush1.msra.mxu0 0.0
  %78 = vmatprep.subr.mxu0 0.0
  %79 = vmatpush1.msra.mxu0 0.0
  %80 = vmatprep.subr.mxu0 0.0
  %81 = vmatpush1.msra.mxu0 0.0
  %82 = vmatprep.subr.mxu0 0.0
  %83 = vmatpush1.msra.mxu0 0.0
  %84 = vmatprep.subr.mxu0 0.0
  %85 = vmatpush1.msra.mxu0 0.0
  %86 = vmatprep.subr.mxu0 0.0
  %87 = vmatpush1.msra.mxu0 0.0
  %88 = vmatprep.subr.mxu0 0.0
  %89 = vmatpush1.msra.mxu0 %v31
  %90 = vmatprep.subr.mxu0 0.0
  %91 = vmatpush1.msra.mxu0 %v30
  %92 = vmatprep.subr.mxu0 0.0
  %93 = vmatpush1.msra.mxu0 %v29
  %94 = vmatprep.subr.mxu0 0.0
  %95 = vmatpush1.msra.mxu0 %v28
  %96 = vmatprep.subr.mxu0 0.0
  %97 = vmatpush2.msra.mxu0 0.0
  %98 = vmatprep.subr.mxu0 0.0
  %99 = vmatpush2.msra.mxu0 0.0
  %100 = vmatprep.subr.mxu0 0.0
  %101 = vmatpush2.msra.mxu0 0.0
  %102 = vmatprep.subr.mxu0 0.0
  %103 = vmatpush2.msra.mxu0 0.0
  %104 = vmatprep.subr.mxu0 0.0
  %105 = vmatpush2.msra.mxu0 0.0
  %106 = vmatprep.subr.mxu0 0.0
  %107 = vmatpush2.msra.mxu0 0.0
  %108 = vmatprep.subr.mxu0 0.0
  %109 = vmatpush2.msra.mxu0 0.0
  %110 = vmatprep.subr.mxu0 0.0
  %111 = vmatpush2.msra.mxu0 0.0
  %112 = vmatprep.subr.mxu0 0.0
  %113 = vmatpush2.msra.mxu0 0.0
  %114 = vmatprep.subr.mxu0 0.0
  %115 = vmatpush2.msra.mxu0 0.0
  %116 = vmatprep.subr.mxu0 0.0
  %117 = vmatpush2.msra.mxu0 0.0
  %118 = vmatprep.subr.mxu0 0.0
  %119 = vmatpush2.msra.mxu0 0.0
  %120 = vmatprep.subr.mxu0 0.0
  %121 = vmatpush2.msra.mxu0 0.0
  %122 = vmatprep.subr.mxu0 0.0
  %123 = vmatpush2.msra.mxu0 0.0
  %124 = vmatprep.subr.mxu0 0.0
  %125 = vmatpush2.msra.mxu0 0.0
  %126 = vmatprep.subr.mxu0 0.0
  %127 = vmatpush2.msra.mxu0 0.0
  %128 = vmatprep.mubr.f32.mxu0 0.0
  %129 = vmatmul.mubr.f32.gmra.mxu0 %v41
  %v130 = vpop.f32.mrf.mxu0
  %v131 = vadd.f32 %v37, %v130
  %v132 = vpop.f32.mrf.mxu0
  %133 = vmatprep.mubr.f32.mxu0 0.0
  %134 = vmatmul.mubr.f32.gmra.mxu0 %v44
  %v135 = vpop.f32.mrf.mxu0
  %v136 = vadd.f32 %v37, %v135
  %v137 = vpop.f32.mrf.mxu0
  %138 = vmatprep.mubr.f32.mxu0 0.0
  %139 = vmatmul.mubr.f32.gmra.mxu0 %v47
  %v140 = vpop.f32.mrf.mxu0
  %v141 = vadd.f32 %v37, %v140
  %v142 = vpop.f32.mrf.mxu0
  %143 = vmatprep.mubr.f32.mxu0 0.0
  %144 = vmatmul.mubr.f32.gmra.mxu0 %v50
  %v145 = vpop.f32.mrf.mxu0
  %v146 = vadd.f32 %v37, %v145
  %v147 = vpop.f32.mrf.mxu0
  %148 = vmatprep.mubr.f32.mxu0 0.0
  %149 = vmatmul.mubr.f32.gmra.mxu0 %v53
  %v150 = vpop.f32.mrf.mxu0
  %v151 = vadd.f32 %v37, %v150
  %v152 = vpop.f32.mrf.mxu0
  %153 = vmatprep.mubr.f32.mxu0 0.0
  %154 = vmatmul.mubr.f32.gmra.mxu0 %v56
  %v155 = vpop.f32.mrf.mxu0
  %v156 = vadd.f32 %v37, %v155
  %v157 = vpop.f32.mrf.mxu0
  %158 = vmatprep.mubr.f32.mxu0 0.0
  %159 = vmatmul.mubr.f32.gmra.mxu0 %v59
  %v160 = vpop.f32.mrf.mxu0
  %v161 = vadd.f32 %v37, %v160
  %v162 = vpop.f32.mrf.mxu0
  %163 = vmatprep.mubr.f32.mxu0 0.0
  %164 = vmatmul.mubr.f32.gmra.mxu0 %v62
  %v165 = vpop.f32.mrf.mxu0
  %v166 = vadd.f32 %v37, %v165
  %v167 = vpop.f32.mrf.mxu0
  %168 = vdwg.mxu0
  %v169 = vmax.f32 %v131, 0.0
  %v170 = vmax.f32 %v136, 0.0
  %v171 = vmax.f32 %v141, 0.0
  %v172 = vmax.f32 %v146, 0.0
  %v173 = vmax.f32 %v151, 0.0
  %v174 = vmax.f32 %v156, 0.0
  %v175 = vmax.f32 %v161, 0.0
  %v176 = vmax.f32 %v166, 0.0
  %v177 = vld [vmem:[%s3] sm:$0xff]
  %v178 = vld [vmem:[%s3 + $0x8] sm:$0xff]
  %v179 = vld [vmem:[%s3 + $0x10] sm:$0xff]
  %v180 = vld [vmem:[%s3 + $0x18] sm:$0xff]
  %v181 = vld [vmem:[%s3 + $0x20] sm:$0xff]
  %v182 = vld [vmem:[%s3 + $0x28] sm:$0xff]
  %v183 = vld [vmem:[%s3 + $0x30] sm:$0xff]
  %v184 = vld [vmem:[%s3 + $0x38] sm:$0xff]
  %v185 = vld [vmem:[%s3 + $0x40] sm:$0xff]
  %v186 = vld [vmem:[%s3 + $0x48] sm:$0xff]
  %v187 = vld [vmem:[%s3 + $0x50] sm:$0xff]
  %v188 = vld [vmem:[%s3 + $0x58] sm:$0xff]
  %v189 = vld [vmem:[%s3 + $0x60] sm:$0xff]
  %v190 = vld [vmem:[%s3 + $0x68] sm:$0xff]
  %v191 = vld [vmem:[%s3 + $0x70] sm:$0xff]
  %v192 = vld [vmem:[%s3 + $0x78] sm:$0xff]
  %v193 = vld [vmem:[%s4] sm:$0x1]
  %v195 = vlaneseq
  %v196 = vshrl.u32 %v195, 7
  %v197 = vsub.s32 0, %v196
  %v198 = vrot.slane %v193, %v197
  %200 = vmatprep.subr.mxu0 0.0
  %201 = vmatpush1.msra.mxu0 %v192
  %202 = vmatprep.subr.mxu0 0.0
  %203 = vmatpush1.msra.mxu0 %v191
  %204 = vmatprep.subr.mxu0 0.0
  %205 = vmatpush1.msra.mxu0 %v190
  %206 = vmatprep.subr.mxu0 0.0
  %207 = vmatpush1.msra.mxu0 %v189
  %208 = vmatprep.subr.mxu0 0.0
  %209 = vmatpush1.msra.mxu0 %v188
  %210 = vmatprep.subr.mxu0 0.0
  %211 = vmatpush1.msra.mxu0 %v187
  %212 = vmatprep.subr.mxu0 0.0
  %213 = vmatpush1.msra.mxu0 %v186
  %214 = vmatprep.subr.mxu0 0.0
  %215 = vmatpush1.msra.mxu0 %v185
  %216 = vmatprep.subr.mxu0 0.0
  %217 = vmatpush1.msra.mxu0 %v184
  %218 = vmatprep.subr.mxu0 0.0
  %219 = vmatpush1.msra.mxu0 %v183
  %220 = vmatprep.subr.mxu0 0.0
  %221 = vmatpush1.msra.mxu0 %v182
  %222 = vmatprep.subr.mxu0 0.0
  %223 = vmatpush1.msra.mxu0 %v181
  %224 = vmatprep.subr.mxu0 0.0
  %225 = vmatpush1.msra.mxu0 %v180
  %226 = vmatprep.subr.mxu0 0.0
  %227 = vmatpush1.msra.mxu0 %v179
  %228 = vmatprep.subr.mxu0 0.0
  %229 = vmatpush1.msra.mxu0 %v178
  %230 = vmatprep.subr.mxu0 0.0
  %231 = vmatpush1.msra.mxu0 %v177
  %232 = vmatprep.subr.mxu0 0.0
  %233 = vmatpush2.msra.mxu0 0.0
  %234 = vmatprep.subr.mxu0 0.0
  %235 = vmatpush2.msra.mxu0 0.0
  %236 = vmatprep.subr.mxu0 0.0
  %237 = vmatpush2.msra.mxu0 0.0
  %238 = vmatprep.subr.mxu0 0.0
  %239 = vmatpush2.msra.mxu0 0.0
  %240 = vmatprep.subr.mxu0 0.0
  %241 = vmatpush2.msra.mxu0 0.0
  %242 = vmatprep.subr.mxu0 0.0
  %243 = vmatpush2.msra.mxu0 0.0
  %244 = vmatprep.subr.mxu0 0.0
  %245 = vmatpush2.msra.mxu0 0.0
  %246 = vmatprep.subr.mxu0 0.0
  %247 = vmatpush2.msra.mxu0 0.0
  %248 = vmatprep.subr.mxu0 0.0
  %249 = vmatpush2.msra.mxu0 0.0
  %250 = vmatprep.subr.mxu0 0.0
  %251 = vmatpush2.msra.mxu0 0.0
  %252 = vmatprep.subr.mxu0 0.0
  %253 = vmatpush2.msra.mxu0 0.0
  %254 = vmatprep.subr.mxu0 0.0
  %255 = vmatpush2.msra.mxu0 0.0
  %256 = vmatprep.subr.mxu0 0.0
  %257 = vmatpush2.msra.mxu0 0.0
  %258 = vmatprep.subr.mxu0 0.0
  %259 = vmatpush2.msra.mxu0 0.0
  %260 = vmatprep.subr.mxu0 0.0
  %261 = vmatpush2.msra.mxu0 0.0
  %262 = vmatprep.subr.mxu0 0.0
  %263 = vmatpush2.msra.mxu0 0.0
  %264 = vmatprep.mubr.f32.mxu0 0.0
  %265 = vmatmul.mubr.f32.gmra.mxu0 %v169
  %v266 = vpop.f32.mrf.mxu0
  %v267 = vadd.f32 %v198, %v266
  %v268 = vpop.f32.mrf.mxu0
  %269 = vmatprep.mubr.f32.mxu0 0.0
  %270 = vmatmul.mubr.f32.gmra.mxu0 %v170
  %v271 = vpop.f32.mrf.mxu0
  %v272 = vadd.f32 %v198, %v271
  %v273 = vpop.f32.mrf.mxu0
  %274 = vmatprep.mubr.f32.mxu0 0.0
  %275 = vmatmul.mubr.f32.gmra.mxu0 %v171
  %v276 = vpop.f32.mrf.mxu0
  %v277 = vadd.f32 %v198, %v276
  %v278 = vpop.f32.mrf.mxu0
  %279 = vmatprep.mubr.f32.mxu0 0.0
  %280 = vmatmul.mubr.f32.gmra.mxu0 %v172
  %v281 = vpop.f32.mrf.mxu0
  %v282 = vadd.f32 %v198, %v281
  %v283 = vpop.f32.mrf.mxu0
  %284 = vmatprep.mubr.f32.mxu0 0.0
  %285 = vmatmul.mubr.f32.gmra.mxu0 %v173
  %v286 = vpop.f32.mrf.mxu0
  %v287 = vadd.f32 %v198, %v286
  %v288 = vpop.f32.mrf.mxu0
  %289 = vmatprep.mubr.f32.mxu0 0.0
  %290 = vmatmul.mubr.f32.gmra.mxu0 %v174
  %v291 = vpop.f32.mrf.mxu0
  %v292 = vadd.f32 %v198, %v291
  %v293 = vpop.f32.mrf.mxu0
  %294 = vmatprep.mubr.f32.mxu0 0.0
  %295 = vmatmul.mubr.f32.gmra.mxu0 %v175
  %v296 = vpop.f32.mrf.mxu0
  %v297 = vadd.f32 %v198, %v296
  %v298 = vpop.f32.mrf.mxu0
  %299 = vmatprep.mubr.f32.mxu0 0.0
  %300 = vmatmul.mubr.f32.gmra.mxu0 %v176
  %v301 = vpop.f32.mrf.mxu0
  %v302 = vadd.f32 %v198, %v301
  %v303 = vpop.f32.mrf.mxu0
  %304 = vdwg.mxu0
  %305 = vmax.xlane.f32.xlu0 %v267
  %v306 = vpop.xlane.xlu0 %305
  %307 = vmax.xlane.f32.xlu0 %v272
  %v308 = vpop.xlane.xlu0 %307
  %309 = vmax.xlane.f32.xlu0 %v277
  %v310 = vpop.xlane.xlu0 %309
  %311 = vmax.xlane.f32.xlu0 %v282
  %v312 = vpop.xlane.xlu0 %311
  %313 = vmax.xlane.f32.xlu0 %v287
  %v314 = vpop.xlane.xlu0 %313
  %315 = vmax.xlane.f32.xlu0 %v292
  %v316 = vpop.xlane.xlu0 %315
  %317 = vmax.xlane.f32.xlu0 %v297
  %v318 = vpop.xlane.xlu0 %317
  %319 = vmax.xlane.f32.xlu0 %v302
  %v320 = vpop.xlane.xlu0 %319
  %v321 = vsub.f32 %v267, %v306
  %v322 = vsub.f32 %v272, %v308
  %v323 = vsub.f32 %v277, %v310
  %v324 = vsub.f32 %v282, %v312
  %v325 = vsub.f32 %v287, %v314
  %v326 = vsub.f32 %v292, %v316
  %v327 = vsub.f32 %v297, %v318
  %v328 = vsub.f32 %v302, %v320
  %v329 = vmul.f32 %v321, 1.442695
  %v330 = vpow.pop %v329
  %v331 = vmul.f32 %v322, 1.442695
  %v332 = vpow.pop %v331
  %v333 = vmul.f32 %v323, 1.442695
  %v334 = vpow.pop %v333
  %v335 = vmul.f32 %v324, 1.442695
  %v336 = vpow.pop %v335
  %v337 = vmul.f32 %v325, 1.442695
  %v338 = vpow.pop %v337
  %v339 = vmul.f32 %v326, 1.442695
  %v340 = vpow.pop %v339
  %v341 = vmul.f32 %v327, 1.442695
  %v342 = vpow.pop %v341
  %v343 = vmul.f32 %v328, 1.442695
  %v344 = vpow.pop %v343
  %345 = vadd.xlane.f32.xlu0 %v330
  %v346 = vpop.xlane.xlu0 %345
  %347 = vadd.xlane.f32.xlu0 %v332
  %v348 = vpop.xlane.xlu0 %347
  %349 = vadd.xlane.f32.xlu0 %v334
  %v350 = vpop.xlane.xlu0 %349
  %351 = vadd.xlane.f32.xlu0 %v336
  %v352 = vpop.xlane.xlu0 %351
  %353 = vadd.xlane.f32.xlu0 %v338
  %v354 = vpop.xlane.xlu0 %353
  %355 = vadd.xlane.f32.xlu0 %v340
  %v356 = vpop.xlane.xlu0 %355
  %357 = vadd.xlane.f32.xlu0 %v342
  %v358 = vpop.xlane.xlu0 %357
  %359 = vadd.xlane.f32.xlu0 %v344
  %v360 = vpop.xlane.xlu0 %359
  %v361 = vrcp.pop %v346
  %v362 = vrcp.pop %v348
  %v363 = vrcp.pop %v350
  %v364 = vrcp.pop %v352
  %v365 = vrcp.pop %v354
  %v366 = vrcp.pop %v356
  %v367 = vrcp.pop %v358
  %v368 = vrcp.pop %v360
  %v369 = vmul.f32 %v346, %v361
  %v370 = vmul.f32 %v348, %v362
  %v371 = vmul.f32 %v350, %v363
  %v372 = vmul.f32 %v352, %v364
  %v373 = vmul.f32 %v354, %v365
  %v374 = vmul.f32 %v356, %v366
  %v375 = vmul.f32 %v358, %v367
  %v376 = vmul.f32 %v360, %v368
  %v377 = vsub.f32 2.0, %v369
  %v378 = vsub.f32 2.0, %v370
  %v379 = vsub.f32 2.0, %v371
  %v380 = vsub.f32 2.0, %v372
  %v381 = vsub.f32 2.0, %v373
  %v382 = vsub.f32 2.0, %v374
  %v383 = vsub.f32 2.0, %v375
  %v384 = vsub.f32 2.0, %v376
  %v385 = vmul.f32 %v361, %v377
  %v386 = vmul.f32 %v362, %v378
  %v387 = vmul.f32 %v363, %v379
  %v388 = vmul.f32 %v364, %v380
  %v389 = vmul.f32 %v365, %v381
  %v390 = vmul.f32 %v366, %v382
  %v391 = vmul.f32 %v367, %v383
  %v392 = vmul.f32 %v368, %v384
  %v393 = vmul.f32 %v330, %v385
  %v394 = vmul.f32 %v332, %v386
  %v395 = vmul.f32 %v334, %v387
  %v396 = vmul.f32 %v336, %v388
  %v397 = vmul.f32 %v338, %v389
  %v398 = vmul.f32 %v340, %v390
  %v399 = vmul.f32 %v342, %v391
  %v400 = vmul.f32 %v344, %v392
  %vm401 = vcmask 64512
  %402 = vst.msk [vmem:[%s5] sm:$0xff] %vm401, %v393
  %403 = vst.msk [vmem:[%s5 + $0x8] sm:$0xff] %vm401, %v394
  %404 = vst.msk [vmem:[%s5 + $0x10] sm:$0xff] %vm401, %v395
  %405 = vst.msk [vmem:[%s5 + $0x18] sm:$0xff] %vm401, %v396
  %406 = vst.msk [vmem:[%s5 + $0x20] sm:$0xff] %vm401, %v397
  %407 = vst.msk [vmem:[%s5 + $0x28] sm:$0xff] %vm401, %v398
  %408 = vst.msk [vmem:[%s5 + $0x30] sm:$0xff] %vm401, %v399
  %409 = vst.msk [vmem:[%s5 + $0x38] sm:$0xff] %vm401, %v400
  // Predicated region
  $region22: #{trpo_forward.1} parent=0 // pred_check
    _
  $region23: #{trpo_forward.1} parent=0 // pred_check_branch
    %411 = sbr.rel (0) target = $region25
  $region24: #{trpo_forward.1} parent=0 // pred_region
    _
  $region25: #{trpo_forward.1} parent=0 // pred_fallthru
    _
  // Predicated region
  $region26: #{trpo_forward.1} parent=0 // pred_check
    _
  $region27: #{trpo_forward.1} parent=0 // pred_check_branch
    %413 = sbr.rel (0) target = $region29
  $region28: #{trpo_forward.1} parent=0 // pred_region
    _
  $region29: #{trpo_forward.1} parent=0 // pred_fallthru
    _

</llo_original>
